<compile_context>
chip_gen: v6e
topology: v6e:2x2x1
jax: 0.10.0
libtpu: 0.0.40
codegen_flags: <defaults>
</compile_context>

<pallas_src>
import jax
import jax.numpy as jnp
from jax.experimental import pallas as pl
from jax.experimental.pallas import tpu as pltpu  # noqa: F401  (TPU backend)


def _round_up(n: int, m: int) -> int:
    return ((n + m - 1) // m) * m


def make_mlp_kernel(n_layers: int, n_actual: int, n_padded: int, out_pads: tuple):
    """Kernel args: (x_ref, w0_ref, ..., w_{L-1}_ref, bias_pack_ref, o_ref)."""

    def kernel(*refs):
        x_ref = refs[0]
        o_ref = refs[-1]
        w_refs = refs[1:1 + n_layers]
        b_ref = refs[1 + n_layers]

        h = x_ref[...]                                  # (N_pad, in_pad), f32, lane-dense
        for i in range(n_layers):
            w = w_refs[i][...]                          # (in_pad_i, out_pad_i)
            b = b_ref[i:i + 1, :out_pads[i]]            # (1, out_pad_i), static lane-aligned slice
            z = jnp.dot(h, w, preferred_element_type=jnp.float32) + b
            if i < n_layers - 1:
                h = jnp.maximum(z, 0.0)                 # ReLU (VPU); zero-padded cols stay 0
            else:
                # softmax over dim=0 (batch axis), numerically stable.
                if n_padded > n_actual:                 # mask padded batch rows (static check)
                    rows = jax.lax.broadcasted_iota(jnp.int32, z.shape, 0)
                    z = jnp.where(rows < n_actual, z, -jnp.inf)
                m = jnp.max(z, axis=0, keepdims=True)
                e = jnp.exp(z - m)
                s = jnp.sum(e, axis=0, keepdims=True)
                # EUP approx reciprocal + one Newton-Raphson step (~f32 accurate, divide off VALU).
                r = pl.reciprocal(s, approx=True)
                r = r * (2.0 - s * r)
                o_ref[...] = (e * r).astype(o_ref.dtype)

    return kernel


def net_forward(x, weights, biases):
    """x: (N, input_size); weights[i]: (in_i, out_i) (pre-transposed); biases[i]: (out_i,)."""
    n_layers = len(weights)
    n, in_dim = x.shape
    out_dim = weights[-1].shape[1]

    # Lane-dense padding of every feature dim; sublane padding of the batch dim.
    n_pad = _round_up(n, 8)
    in_pad = _round_up(in_dim, 128)
    out_pads = tuple(_round_up(w.shape[1], 128) for w in weights)
    in_pads = (in_pad,) + out_pads[:-1]
    max_out_pad = max(out_pads)

    x_p = jnp.zeros((n_pad, in_pad), jnp.float32).at[:n, :in_dim].set(x)

    w_p = []
    for w, ip, op in zip(weights, in_pads, out_pads):
        w_p.append(jnp.zeros((ip, op), jnp.float32).at[:w.shape[0], :w.shape[1]].set(w))

    # Pack all biases into a single lane-dense slab: one DMA, no masked partial loads.
    b_pack = jnp.zeros((n_layers, max_out_pad), jnp.float32)
    for i, b in enumerate(biases):
        b_pack = b_pack.at[i, :b.shape[0]].set(b)

    args = [x_p] + w_p + [b_pack]
    in_specs = [
        pl.BlockSpec(a.shape, lambda *_, _nd=a.ndim: (0,) * _nd) for a in args
    ]

    kernel = make_mlp_kernel(n_layers, n, n_pad, out_pads)

    out_p = pl.pallas_call(
        kernel,
        out_shape=jax.ShapeDtypeStruct((n_pad, out_pads[-1]), jnp.float32),
        in_specs=in_specs,
        out_specs=pl.BlockSpec((n_pad, out_pads[-1]), lambda *_: (0, 0)),
    )(*args)

    return out_p[:n, :out_dim]


def init_params(key, input_size, params, output_size):
    """Deterministic init mimicking PyTorch nn.Linear default (U(-k, k), k = 1/sqrt(fan_in))."""
    dims = [input_size] + list(params) + [output_size]
    weights, biases = [], []
    for i in range(len(dims) - 1):
        fan_in, fan_out = dims[i], dims[i + 1]
        key, kw, kb = jax.random.split(key, 3)
        k = 1.0 / jnp.sqrt(fan_in)
        # store pre-transposed as (in, out)
        w = jax.random.uniform(kw, (fan_in, fan_out), jnp.float32, -k, k)
        b = jax.random.uniform(kb, (fan_out,), jnp.float32, -k, k)
        weights.append(w)
        biases.append(b)
    return weights, biases


def reference_forward(x, weights, biases):
    h = x
    for w, b in zip(weights[:-1], biases[:-1]):
        h = jnp.maximum(h @ w + b, 0.0)
    z = h @ weights[-1] + biases[-1]
    return jax.nn.softmax(z, axis=0)


if __name__ == "__main__":
    # Shapes consistent with Net(input_size=32, params=[64, 48], output_size=16)
    batch = 8
    input_size = 32
    hidden_params = [64, 48]
    output_size = 16

    key = jax.random.PRNGKey(0)
    key, kx = jax.random.split(key)
    x = jax.random.normal(kx, (batch, input_size), jnp.float32)

    weights, biases = init_params(key, input_size, hidden_params, output_size)

    out = net_forward(x, weights, biases)
    out = jax.block_until_ready(out)

    ref = reference_forward(x, weights, biases)
    assert out.shape == (batch, output_size)
    assert jnp.allclose(out, ref, atol=1e-4, rtol=1e-4), "Pallas output mismatch vs reference"
    # columns of softmax(dim=0) each sum to 1 over the batch axis
    assert jnp.allclose(jnp.sum(out, axis=0), jnp.ones((output_size,)), atol=1e-4)

    print("KERNEL_OK")
</pallas_src>

<mosaic_0001>
module attributes {stable_mosaic.version = 11 : i64} {
  func.func @kernel(%arg0: memref<8x128xf32, #tpu.memory_space<vmem>>, %arg1: memref<128x128xf32, #tpu.memory_space<vmem>>, %arg2: memref<128x128xf32, #tpu.memory_space<vmem>>, %arg3: memref<128x128xf32, #tpu.memory_space<vmem>>, %arg4: memref<3x128xf32, #tpu.memory_space<vmem>>, %arg5: memref<8x128xf32, #tpu.memory_space<vmem>>) attributes {dimension_semantics = [], scalar_prefetch = 0 : i64, scratch_operands = 0 : i64, tpu.core_type = #tpu.core_type<tc>} {
    %c0 = arith.constant 0 : index
    %c0_0 = arith.constant 0 : index
    %0 = vector.load %arg0[%c0, %c0_0] : memref<8x128xf32, #tpu.memory_space<vmem>>, vector<8x128xf32>
    %c0_1 = arith.constant 0 : index
    %c0_2 = arith.constant 0 : index
    %1 = vector.load %arg1[%c0_1, %c0_2] : memref<128x128xf32, #tpu.memory_space<vmem>>, vector<128x128xf32>
    %c0_3 = arith.constant 0 : index
    %c0_4 = arith.constant 0 : index
    %2 = vector.load %arg4[%c0_3, %c0_4] : memref<3x128xf32, #tpu.memory_space<vmem>>, vector<1x128xf32>
    %cst = arith.constant dense<0.000000e+00> : vector<8x128xf32>
    %3 = tpu.matmul %0, %1, %cst {dimension_numbers = #tpu.dot_dimension_numbers<[1], [0], [0], [1], [0, 0, 1, 1], [], []>} : vector<8x128xf32>, vector<128x128xf32>, vector<8x128xf32> -> vector<8x128xf32>
    %4 = vector.broadcast %2 : vector<1x128xf32> to vector<8x128xf32>
    %5 = arith.addf %3, %4 : vector<8x128xf32>
    %cst_5 = arith.constant 0.000000e+00 : f32
    %6 = vector.broadcast %cst_5 : f32 to vector<8x128xf32>
    %7 = arith.maximumf %5, %6 : vector<8x128xf32>
    %c0_6 = arith.constant 0 : index
    %c0_7 = arith.constant 0 : index
    %8 = vector.load %arg2[%c0_6, %c0_7] : memref<128x128xf32, #tpu.memory_space<vmem>>, vector<128x128xf32>
    %c1 = arith.constant 1 : index
    %c0_8 = arith.constant 0 : index
    %9 = vector.load %arg4[%c1, %c0_8] : memref<3x128xf32, #tpu.memory_space<vmem>>, vector<1x128xf32>
    %cst_9 = arith.constant dense<0.000000e+00> : vector<8x128xf32>
    %10 = tpu.matmul %7, %8, %cst_9 {dimension_numbers = #tpu.dot_dimension_numbers<[1], [0], [0], [1], [0, 0, 1, 1], [], []>} : vector<8x128xf32>, vector<128x128xf32>, vector<8x128xf32> -> vector<8x128xf32>
    %11 = vector.broadcast %9 : vector<1x128xf32> to vector<8x128xf32>
    %12 = arith.addf %10, %11 : vector<8x128xf32>
    %cst_10 = arith.constant 0.000000e+00 : f32
    %13 = vector.broadcast %cst_10 : f32 to vector<8x128xf32>
    %14 = arith.maximumf %12, %13 : vector<8x128xf32>
    %c0_11 = arith.constant 0 : index
    %c0_12 = arith.constant 0 : index
    %15 = vector.load %arg3[%c0_11, %c0_12] : memref<128x128xf32, #tpu.memory_space<vmem>>, vector<128x128xf32>
    %c2 = arith.constant 2 : index
    %c0_13 = arith.constant 0 : index
    %16 = vector.load %arg4[%c2, %c0_13] : memref<3x128xf32, #tpu.memory_space<vmem>>, vector<1x128xf32>
    %cst_14 = arith.constant dense<0.000000e+00> : vector<8x128xf32>
    %17 = tpu.matmul %14, %15, %cst_14 {dimension_numbers = #tpu.dot_dimension_numbers<[1], [0], [0], [1], [0, 0, 1, 1], [], []>} : vector<8x128xf32>, vector<128x128xf32>, vector<8x128xf32> -> vector<8x128xf32>
    %18 = vector.broadcast %16 : vector<1x128xf32> to vector<8x128xf32>
    %19 = arith.addf %17, %18 : vector<8x128xf32>
    %cst_15 = arith.constant dense<0xFF800000> : vector<128xf32>
    %20 = vector.multi_reduction <maximumf>, %19, %cst_15 [0] : vector<8x128xf32> to vector<128xf32>
    %21 = vector.shape_cast %20 : vector<128xf32> to vector<1x128xf32>
    %22 = vector.broadcast %21 : vector<1x128xf32> to vector<8x128xf32>
    %23 = arith.subf %19, %22 : vector<8x128xf32>
    %24 = math.exp %23 : vector<8x128xf32>
    %cst_16 = arith.constant dense<0.000000e+00> : vector<128xf32>
    %25 = vector.multi_reduction <add>, %24, %cst_16 [0] : vector<8x128xf32> to vector<128xf32>
    %26 = vector.shape_cast %25 : vector<128xf32> to vector<1x128xf32>
    %27 = tpu.reciprocal %26 {approx = true} : vector<1x128xf32> -> vector<1x128xf32>
    %28 = arith.mulf %26, %27 : vector<1x128xf32>
    %cst_17 = arith.constant 2.000000e+00 : f32
    %29 = vector.broadcast %cst_17 : f32 to vector<1x128xf32>
    %30 = arith.subf %29, %28 : vector<1x128xf32>
    %31 = arith.mulf %27, %30 : vector<1x128xf32>
    %32 = vector.broadcast %31 : vector<1x128xf32> to vector<8x128xf32>
    %33 = arith.mulf %24, %32 : vector<8x128xf32>
    %c0_18 = arith.constant 0 : index
    %c0_19 = arith.constant 0 : index
    %34 = vector.load %arg5[%c0_18, %c0_19] : memref<8x128xf32, #tpu.memory_space<vmem>>, vector<8x128xf32>
    tpu.vector_store %arg5[%c0_18, %c0_19], %33 {strides = array<i32>} : memref<8x128xf32, #tpu.memory_space<vmem>>, vector<8x128xf32>,
    return
  }
}

</mosaic_0001>

<llo_original>
// kernel: tpu_custom_call.1
$region0: #{tpu_custom_call.1}
  #allocation0 [shape = 'u32[]', space=smem, size = 0x4, offset = 0x4, fixed_abs, tag = 'smem constant byte address 0x4 - core index']
  #allocation1 [shape = 'u32[144,128]{1,0:T(1,128)}', space=vmem, size = 0x12000, scoped, tag = 'internal scratch']
  %s0 = inlined_call_operand.hbm [shape: f32[8,128], index: 0, kind: input, shape index: {}]
  %s1 = inlined_call_operand.hbm [shape: f32[128,128], index: 1, kind: input, shape index: {}]
  %s2 = inlined_call_operand.hbm [shape: f32[128,128], index: 2, kind: input, shape index: {}]
  %s3 = inlined_call_operand.hbm [shape: f32[128,128], index: 3, kind: input, shape index: {}]
  %s4 = inlined_call_operand.vmem [shape: f32[3,128], index: 4, kind: input, shape index: {}]
  %s5 = inlined_call_operand.hbm [shape: f32[8,128], index: 5, kind: output, shape index: {}]
  %s6 = sld [smem:[#allocation0]]
  $region46: #{tpu_custom_call.1} parent=0
    _
  %s8 = ssub.s32 1, %s6
  %s9 = scalar_select 0, %s8, %s6
  $region1: #{tpu_custom_call.1} parent=0
    #allocation2 [shape = 'u8[4096]{0}', space=vmem, size = 0x1000, scoped, tag = 'input window, operand 0, single buffered']
    #allocation3 [shape = 's32[1]{0}', space=sflag, size = 0x4, scoped, tag = 'scoped memory for tpu_custom_call.1']
    #allocation4 [shape = 's32[1]{0}', space=sflag, size = 0x4, scoped, tag = 'scoped memory for tpu_custom_call.1']
    #allocation5 [shape = 'u8[65536]{0}', space=vmem, size = 0x10000, scoped, tag = 'input window, operand 1, single buffered']
    #allocation6 [shape = 's32[1]{0}', space=sflag, size = 0x4, scoped, tag = 'scoped memory for tpu_custom_call.1']
    #allocation7 [shape = 'u8[65536]{0}', space=vmem, size = 0x10000, scoped, tag = 'input window, operand 2, single buffered']
    #allocation8 [shape = 'u8[65536]{0}', space=vmem, size = 0x10000, scoped, tag = 'input window, operand 3, single buffered']
    #allocation9 [shape = 's32[1]{0}', space=sflag, size = 0x4, scoped, tag = 'scoped memory for tpu_custom_call.1']
    #allocation10 [shape = 'u8[4096]{0}', space=vmem, size = 0x1000, scoped, tag = 'output window, operand 0, single buffered']
    %10 = vsyncpa [#allocation3], 0
    %11 = vsyncpa [#allocation6], 0
    %12 = vsyncpa [#allocation9], 0
    %13 = vsyncpa [#allocation4], 0
    // Predicated region
    $region2: #{tpu_custom_call.1} parent=1 // pred_check
      _
    $region3: #{tpu_custom_call.1} parent=1 // pred_check_branch
      %15 = sbr.rel (0) target = $region5
    $region4: #{tpu_custom_call.1} parent=1 // pred_region
      %s17 = ssub.s32 128, 128
      %18 = vsyncadd [#allocation3], %s17
      %s20 = sshll.u32 [#allocation2], 4
      %s21 = int_to_ptr.vmem [resolvable:$true] %s20
      %23 = dma.hbm_to_vmem [thread:$0]  %s0, 128, %s21, [#allocation3]
    $region5: #{tpu_custom_call.1} parent=1 // pred_fallthru
      _
    // Predicated region
    $region6: #{tpu_custom_call.1} parent=1 // pred_check
      _
    $region7: #{tpu_custom_call.1} parent=1 // pred_check_branch
      %25 = sbr.rel (0) target = $region9
    $region8: #{tpu_custom_call.1} parent=1 // pred_region
      %s27 = ssub.s32 2048, 2048
      %28 = vsyncadd [#allocation6], %s27
      %s29 = sshll.u32 [#allocation5], 4
      %s30 = int_to_ptr.vmem [resolvable:$true] %s29
      %35 = dma.hbm_to_vmem [thread:$0]  %s1, 2048, %s30, [#allocation6], 128, 128, 8
    $region9: #{tpu_custom_call.1} parent=1 // pred_fallthru
      _
    // Predicated region
    $region10: #{tpu_custom_call.1} parent=1 // pred_check
      _
    $region11: #{tpu_custom_call.1} parent=1 // pred_check_branch
      %37 = sbr.rel (0) target = $region13
    $region12: #{tpu_custom_call.1} parent=1 // pred_region
      %s39 = ssub.s32 2048, 2048
      %40 = vsyncadd [#allocation6], %s39
      %s41 = sshll.u32 [#allocation7], 4
      %s42 = int_to_ptr.vmem [resolvable:$true] %s41
      %47 = dma.hbm_to_vmem [thread:$0]  %s2, 2048, %s42, [#allocation6], 128, 128, 8
    $region13: #{tpu_custom_call.1} parent=1 // pred_fallthru
      _
    // Predicated region
    $region14: #{tpu_custom_call.1} parent=1 // pred_check
      _
    $region15: #{tpu_custom_call.1} parent=1 // pred_check_branch
      %49 = sbr.rel (0) target = $region17
    $region16: #{tpu_custom_call.1} parent=1 // pred_region
      %s51 = ssub.s32 2048, 2048
      %52 = vsyncadd [#allocation9], %s51
      %s53 = sshll.u32 [#allocation8], 4
      %s54 = int_to_ptr.vmem [resolvable:$true] %s53
      %59 = dma.hbm_to_vmem [thread:$0]  %s3, 2048, %s54, [#allocation9], 128, 128, 8
    $region17: #{tpu_custom_call.1} parent=1 // pred_fallthru
      _
    // Predicated region
    $region18: #{tpu_custom_call.1} parent=1 // pred_check
      _
    $region19: #{tpu_custom_call.1} parent=1 // pred_check_branch
      %61 = sbr.rel (0) target = $region21
    $region20: #{tpu_custom_call.1} parent=1 // pred_region
      _
    $region21: #{tpu_custom_call.1} parent=1 // pred_fallthru
      _
    // Predicated region
    $region22: #{tpu_custom_call.1} parent=1 // pred_check
      _
    $region23: #{tpu_custom_call.1} parent=1 // pred_check_branch
      %63 = sbr.rel (0) target = $region25
    $region24: #{tpu_custom_call.1} parent=1 // pred_region
      %64 = dma.done [#allocation3], 128
    $region25: #{tpu_custom_call.1} parent=1 // pred_fallthru
      _
    // Predicated region
    $region26: #{tpu_custom_call.1} parent=1 // pred_check
      _
    $region27: #{tpu_custom_call.1} parent=1 // pred_check_branch
      %66 = sbr.rel (0) target = $region29
    $region28: #{tpu_custom_call.1} parent=1 // pred_region
      %67 = dma.done [#allocation6], 2048
    $region29: #{tpu_custom_call.1} parent=1 // pred_fallthru
      _
    // Predicated region
    $region30: #{tpu_custom_call.1} parent=1 // pred_check
      _
    $region31: #{tpu_custom_call.1} parent=1 // pred_check_branch
      %69 = sbr.rel (0) target = $region33
    $region32: #{tpu_custom_call.1} parent=1 // pred_region
      %70 = dma.done [#allocation6], 2048
    $region33: #{tpu_custom_call.1} parent=1 // pred_fallthru
      _
    // Predicated region
    $region34: #{tpu_custom_call.1} parent=1 // pred_check
      _
    $region35: #{tpu_custom_call.1} parent=1 // pred_check_branch
      %72 = sbr.rel (0) target = $region37
    $region36: #{tpu_custom_call.1} parent=1 // pred_region
      %73 = dma.done [#allocation9], 2048
    $region37: #{tpu_custom_call.1} parent=1 // pred_fallthru
      _
    %v74 = vld [vmem:[#allocation2] sm:$0xff]
    %v75 = vld [vmem:[#allocation5] sm:$0xff]
    %v76 = vld [vmem:[#allocation5 + $0x8] sm:$0xff]
    %v77 = vld [vmem:[#allocation5 + $0x10] sm:$0xff]
    %v78 = vld [vmem:[#allocation5 + $0x18] sm:$0xff]
    %v79 = vld [vmem:[#allocation5 + $0x20] sm:$0xff]
    %v80 = vld [vmem:[#allocation5 + $0x28] sm:$0xff]
    %v81 = vld [vmem:[#allocation5 + $0x30] sm:$0xff]
    %v82 = vld [vmem:[#allocation5 + $0x38] sm:$0xff]
    %v83 = vld [vmem:[#allocation5 + $0x40] sm:$0xff]
    %v84 = vld [vmem:[#allocation5 + $0x48] sm:$0xff]
    %v85 = vld [vmem:[#allocation5 + $0x50] sm:$0xff]
    %v86 = vld [vmem:[#allocation5 + $0x58] sm:$0xff]
    %v87 = vld [vmem:[#allocation5 + $0x60] sm:$0xff]
    %v88 = vld [vmem:[#allocation5 + $0x68] sm:$0xff]
    %v89 = vld [vmem:[#allocation5 + $0x70] sm:$0xff]
    %v90 = vld [vmem:[#allocation5 + $0x78] sm:$0xff]
    %v91 = vld [vmem:[%s4] sm:$0x1]
    %v92 = vlaneseq
    %v93 = vshrl.u32 %v92, 7
    %v94 = vsub.s32 0, %v93
    %v95 = vrot.slane %v91, %v94
    %96 = vmatprep.subr.mxu0 0.0
    %97 = vmatpush1.msra.mxu0 %v90
    %98 = vmatprep.subr.mxu0 0.0
    %99 = vmatpush1.msra.mxu0 %v89
    %100 = vmatprep.subr.mxu0 0.0
    %101 = vmatpush1.msra.mxu0 %v88
    %102 = vmatprep.subr.mxu0 0.0
    %103 = vmatpush1.msra.mxu0 %v87
    %104 = vmatprep.subr.mxu0 0.0
    %105 = vmatpush1.msra.mxu0 %v86
    %106 = vmatprep.subr.mxu0 0.0
    %107 = vmatpush1.msra.mxu0 %v85
    %108 = vmatprep.subr.mxu0 0.0
    %109 = vmatpush1.msra.mxu0 %v84
    %110 = vmatprep.subr.mxu0 0.0
    %111 = vmatpush1.msra.mxu0 %v83
    %112 = vmatprep.subr.mxu0 0.0
    %113 = vmatpush1.msra.mxu0 %v82
    %114 = vmatprep.subr.mxu0 0.0
    %115 = vmatpush1.msra.mxu0 %v81
    %116 = vmatprep.subr.mxu0 0.0
    %117 = vmatpush1.msra.mxu0 %v80
    %118 = vmatprep.subr.mxu0 0.0
    %119 = vmatpush1.msra.mxu0 %v79
    %120 = vmatprep.subr.mxu0 0.0
    %121 = vmatpush1.msra.mxu0 %v78
    %122 = vmatprep.subr.mxu0 0.0
    %123 = vmatpush1.msra.mxu0 %v77
    %124 = vmatprep.subr.mxu0 0.0
    %125 = vmatpush1.msra.mxu0 %v76
    %126 = vmatprep.subr.mxu0 0.0
    %127 = vmatpush1.msra.mxu0 %v75
    %128 = vmatprep.subr.mxu0 0.0
    %129 = vmatpush2.msra.mxu0 0.0
    %130 = vmatprep.subr.mxu0 0.0
    %131 = vmatpush2.msra.mxu0 0.0
    %132 = vmatprep.subr.mxu0 0.0
    %133 = vmatpush2.msra.mxu0 0.0
    %134 = vmatprep.subr.mxu0 0.0
    %135 = vmatpush2.msra.mxu0 0.0
    %136 = vmatprep.subr.mxu0 0.0
    %137 = vmatpush2.msra.mxu0 0.0
    %138 = vmatprep.subr.mxu0 0.0
    %139 = vmatpush2.msra.mxu0 0.0
    %140 = vmatprep.subr.mxu0 0.0
    %141 = vmatpush2.msra.mxu0 0.0
    %142 = vmatprep.subr.mxu0 0.0
    %143 = vmatpush2.msra.mxu0 0.0
    %144 = vmatprep.subr.mxu0 0.0
    %145 = vmatpush2.msra.mxu0 0.0
    %146 = vmatprep.subr.mxu0 0.0
    %147 = vmatpush2.msra.mxu0 0.0
    %148 = vmatprep.subr.mxu0 0.0
    %149 = vmatpush2.msra.mxu0 0.0
    %150 = vmatprep.subr.mxu0 0.0
    %151 = vmatpush2.msra.mxu0 0.0
    %152 = vmatprep.subr.mxu0 0.0
    %153 = vmatpush2.msra.mxu0 0.0
    %154 = vmatprep.subr.mxu0 0.0
    %155 = vmatpush2.msra.mxu0 0.0
    %156 = vmatprep.subr.mxu0 0.0
    %157 = vmatpush2.msra.mxu0 0.0
    %158 = vmatprep.subr.mxu0 0.0
    %159 = vmatpush2.msra.mxu0 0.0
    %160 = vmatprep.mubr.f32.mxu0 0.0
    %161 = vmatmul.mubr.f32.gmra.mxu0 %v74
    %v162 = vpop.f32.mrf.mxu0
    %v163 = vadd.f32 %v95, %v162
    %v164 = vpop.f32.mrf.mxu0
    %165 = vdwg.mxu0
    %v166 = vmax.f32 %v163, 0.0
    %v167 = vld [vmem:[#allocation7] sm:$0xff]
    %v168 = vld [vmem:[#allocation7 + $0x8] sm:$0xff]
    %v169 = vld [vmem:[#allocation7 + $0x10] sm:$0xff]
    %v170 = vld [vmem:[#allocation7 + $0x18] sm:$0xff]
    %v171 = vld [vmem:[#allocation7 + $0x20] sm:$0xff]
    %v172 = vld [vmem:[#allocation7 + $0x28] sm:$0xff]
    %v173 = vld [vmem:[#allocation7 + $0x30] sm:$0xff]
    %v174 = vld [vmem:[#allocation7 + $0x38] sm:$0xff]
    %v175 = vld [vmem:[#allocation7 + $0x40] sm:$0xff]
    %v176 = vld [vmem:[#allocation7 + $0x48] sm:$0xff]
    %v177 = vld [vmem:[#allocation7 + $0x50] sm:$0xff]
    %v178 = vld [vmem:[#allocation7 + $0x58] sm:$0xff]
    %v179 = vld [vmem:[#allocation7 + $0x60] sm:$0xff]
    %v180 = vld [vmem:[#allocation7 + $0x68] sm:$0xff]
    %v181 = vld [vmem:[#allocation7 + $0x70] sm:$0xff]
    %v182 = vld [vmem:[#allocation7 + $0x78] sm:$0xff]
    %v183 = vld [vmem:[%s4 + $0x1] sm:$0x1]
    %v184 = vlaneseq
    %v185 = vshrl.u32 %v184, 7
    %v186 = vsub.s32 0, %v185
    %v187 = vrot.slane %v183, %v186
    %188 = vmatprep.subr.mxu0 0.0
    %189 = vmatpush1.msra.mxu0 %v182
    %190 = vmatprep.subr.mxu0 0.0
    %191 = vmatpush1.msra.mxu0 %v181
    %192 = vmatprep.subr.mxu0 0.0
    %193 = vmatpush1.msra.mxu0 %v180
    %194 = vmatprep.subr.mxu0 0.0
    %195 = vmatpush1.msra.mxu0 %v179
    %196 = vmatprep.subr.mxu0 0.0
    %197 = vmatpush1.msra.mxu0 %v178
    %198 = vmatprep.subr.mxu0 0.0
    %199 = vmatpush1.msra.mxu0 %v177
    %200 = vmatprep.subr.mxu0 0.0
    %201 = vmatpush1.msra.mxu0 %v176
    %202 = vmatprep.subr.mxu0 0.0
    %203 = vmatpush1.msra.mxu0 %v175
    %204 = vmatprep.subr.mxu0 0.0
    %205 = vmatpush1.msra.mxu0 %v174
    %206 = vmatprep.subr.mxu0 0.0
    %207 = vmatpush1.msra.mxu0 %v173
    %208 = vmatprep.subr.mxu0 0.0
    %209 = vmatpush1.msra.mxu0 %v172
    %210 = vmatprep.subr.mxu0 0.0
    %211 = vmatpush1.msra.mxu0 %v171
    %212 = vmatprep.subr.mxu0 0.0
    %213 = vmatpush1.msra.mxu0 %v170
    %214 = vmatprep.subr.mxu0 0.0
    %215 = vmatpush1.msra.mxu0 %v169
    %216 = vmatprep.subr.mxu0 0.0
    %217 = vmatpush1.msra.mxu0 %v168
    %218 = vmatprep.subr.mxu0 0.0
    %219 = vmatpush1.msra.mxu0 %v167
    %220 = vmatprep.subr.mxu0 0.0
    %221 = vmatpush2.msra.mxu0 0.0
    %222 = vmatprep.subr.mxu0 0.0
    %223 = vmatpush2.msra.mxu0 0.0
    %224 = vmatprep.subr.mxu0 0.0
    %225 = vmatpush2.msra.mxu0 0.0
    %226 = vmatprep.subr.mxu0 0.0
    %227 = vmatpush2.msra.mxu0 0.0
    %228 = vmatprep.subr.mxu0 0.0
    %229 = vmatpush2.msra.mxu0 0.0
    %230 = vmatprep.subr.mxu0 0.0
    %231 = vmatpush2.msra.mxu0 0.0
    %232 = vmatprep.subr.mxu0 0.0
    %233 = vmatpush2.msra.mxu0 0.0
    %234 = vmatprep.subr.mxu0 0.0
    %235 = vmatpush2.msra.mxu0 0.0
    %236 = vmatprep.subr.mxu0 0.0
    %237 = vmatpush2.msra.mxu0 0.0
    %238 = vmatprep.subr.mxu0 0.0
    %239 = vmatpush2.msra.mxu0 0.0
    %240 = vmatprep.subr.mxu0 0.0
    %241 = vmatpush2.msra.mxu0 0.0
    %242 = vmatprep.subr.mxu0 0.0
    %243 = vmatpush2.msra.mxu0 0.0
    %244 = vmatprep.subr.mxu0 0.0
    %245 = vmatpush2.msra.mxu0 0.0
    %246 = vmatprep.subr.mxu0 0.0
    %247 = vmatpush2.msra.mxu0 0.0
    %248 = vmatprep.subr.mxu0 0.0
    %249 = vmatpush2.msra.mxu0 0.0
    %250 = vmatprep.subr.mxu0 0.0
    %251 = vmatpush2.msra.mxu0 0.0
    %252 = vmatprep.mubr.f32.mxu0 0.0
    %253 = vmatmul.mubr.f32.gmra.mxu0 %v166
    %v254 = vpop.f32.mrf.mxu0
    %v255 = vadd.f32 %v187, %v254
    %v256 = vpop.f32.mrf.mxu0
    %257 = vdwg.mxu0
    %v258 = vmax.f32 %v255, 0.0
    %v259 = vld [vmem:[#allocation8] sm:$0xff]
    %v260 = vld [vmem:[#allocation8 + $0x8] sm:$0xff]
    %v261 = vld [vmem:[#allocation8 + $0x10] sm:$0xff]
    %v262 = vld [vmem:[#allocation8 + $0x18] sm:$0xff]
    %v263 = vld [vmem:[#allocation8 + $0x20] sm:$0xff]
    %v264 = vld [vmem:[#allocation8 + $0x28] sm:$0xff]
    %v265 = vld [vmem:[#allocation8 + $0x30] sm:$0xff]
    %v266 = vld [vmem:[#allocation8 + $0x38] sm:$0xff]
    %v267 = vld [vmem:[#allocation8 + $0x40] sm:$0xff]
    %v268 = vld [vmem:[#allocation8 + $0x48] sm:$0xff]
    %v269 = vld [vmem:[#allocation8 + $0x50] sm:$0xff]
    %v270 = vld [vmem:[#allocation8 + $0x58] sm:$0xff]
    %v271 = vld [vmem:[#allocation8 + $0x60] sm:$0xff]
    %v272 = vld [vmem:[#allocation8 + $0x68] sm:$0xff]
    %v273 = vld [vmem:[#allocation8 + $0x70] sm:$0xff]
    %v274 = vld [vmem:[#allocation8 + $0x78] sm:$0xff]
    %v275 = vld [vmem:[%s4 + $0x2] sm:$0x1]
    %v276 = vlaneseq
    %v277 = vshrl.u32 %v276, 7
    %v278 = vsub.s32 0, %v277
    %v279 = vrot.slane %v275, %v278
    %280 = vmatprep.subr.mxu0 0.0
    %281 = vmatpush1.msra.mxu0 %v274
    %282 = vmatprep.subr.mxu0 0.0
    %283 = vmatpush1.msra.mxu0 %v273
    %284 = vmatprep.subr.mxu0 0.0
    %285 = vmatpush1.msra.mxu0 %v272
    %286 = vmatprep.subr.mxu0 0.0
    %287 = vmatpush1.msra.mxu0 %v271
    %288 = vmatprep.subr.mxu0 0.0
    %289 = vmatpush1.msra.mxu0 %v270
    %290 = vmatprep.subr.mxu0 0.0
    %291 = vmatpush1.msra.mxu0 %v269
    %292 = vmatprep.subr.mxu0 0.0
    %293 = vmatpush1.msra.mxu0 %v268
    %294 = vmatprep.subr.mxu0 0.0
    %295 = vmatpush1.msra.mxu0 %v267
    %296 = vmatprep.subr.mxu0 0.0
    %297 = vmatpush1.msra.mxu0 %v266
    %298 = vmatprep.subr.mxu0 0.0
    %299 = vmatpush1.msra.mxu0 %v265
    %300 = vmatprep.subr.mxu0 0.0
    %301 = vmatpush1.msra.mxu0 %v264
    %302 = vmatprep.subr.mxu0 0.0
    %303 = vmatpush1.msra.mxu0 %v263
    %304 = vmatprep.subr.mxu0 0.0
    %305 = vmatpush1.msra.mxu0 %v262
    %306 = vmatprep.subr.mxu0 0.0
    %307 = vmatpush1.msra.mxu0 %v261
    %308 = vmatprep.subr.mxu0 0.0
    %309 = vmatpush1.msra.mxu0 %v260
    %310 = vmatprep.subr.mxu0 0.0
    %311 = vmatpush1.msra.mxu0 %v259
    %312 = vmatprep.subr.mxu0 0.0
    %313 = vmatpush2.msra.mxu0 0.0
    %314 = vmatprep.subr.mxu0 0.0
    %315 = vmatpush2.msra.mxu0 0.0
    %316 = vmatprep.subr.mxu0 0.0
    %317 = vmatpush2.msra.mxu0 0.0
    %318 = vmatprep.subr.mxu0 0.0
    %319 = vmatpush2.msra.mxu0 0.0
    %320 = vmatprep.subr.mxu0 0.0
    %321 = vmatpush2.msra.mxu0 0.0
    %322 = vmatprep.subr.mxu0 0.0
    %323 = vmatpush2.msra.mxu0 0.0
    %324 = vmatprep.subr.mxu0 0.0
    %325 = vmatpush2.msra.mxu0 0.0
    %326 = vmatprep.subr.mxu0 0.0
    %327 = vmatpush2.msra.mxu0 0.0
    %328 = vmatprep.subr.mxu0 0.0
    %329 = vmatpush2.msra.mxu0 0.0
    %330 = vmatprep.subr.mxu0 0.0
    %331 = vmatpush2.msra.mxu0 0.0
    %332 = vmatprep.subr.mxu0 0.0
    %333 = vmatpush2.msra.mxu0 0.0
    %334 = vmatprep.subr.mxu0 0.0
    %335 = vmatpush2.msra.mxu0 0.0
    %336 = vmatprep.subr.mxu0 0.0
    %337 = vmatpush2.msra.mxu0 0.0
    %338 = vmatprep.subr.mxu0 0.0
    %339 = vmatpush2.msra.mxu0 0.0
    %340 = vmatprep.subr.mxu0 0.0
    %341 = vmatpush2.msra.mxu0 0.0
    %342 = vmatprep.subr.mxu0 0.0
    %343 = vmatpush2.msra.mxu0 0.0
    %344 = vmatprep.mubr.f32.mxu0 0.0
    %345 = vmatmul.mubr.f32.gmra.mxu0 %v258
    %v346 = vpop.f32.mrf.mxu0
    %v347 = vadd.f32 %v279, %v346
    %v348 = vpop.f32.mrf.mxu0
    %349 = vdwg.mxu0
    %v350 = vrot.slane %v347, 4
    %v351 = vmax.f32 %v347, %v350
    %v352 = vrot.slane %v351, 2
    %v353 = vmax.f32 %v351, %v352
    %v354 = vrot.slane %v353, 1
    %v355 = vmax.f32 %v353, %v354
    %v356 = vsub.f32 %v347, %v355
    %v357 = vmul.f32 %v356, 1.442695
    %v358 = vpow.pop %v357
    %v359 = vrot.slane %v358, 4
    %v360 = vadd.f32 %v358, %v359
    %v361 = vrot.slane %v360, 2
    %v362 = vadd.f32 %v360, %v361
    %v363 = vrot.slane %v362, 1
    %v364 = vadd.f32 %v362, %v363
    %v365 = vrcp.pop %v364
    %v366 = vmul.f32 %v364, %v365
    %v367 = vsub.f32 2.0, %v366
    %v368 = vmul.f32 %v365, %v367
    %v369 = vmul.f32 %v358, %v368
    %370 = vst [vmem:[#allocation10] sm:$0xff] %v369
    // Predicated region
    $region38: #{tpu_custom_call.1} parent=1 // pred_check
      _
    $region39: #{tpu_custom_call.1} parent=1 // pred_check_branch
      %372 = sbr.rel (0) target = $region41
    $region40: #{tpu_custom_call.1} parent=1 // pred_region
      %s374 = ssub.s32 128, 128
      %375 = vsyncadd [#allocation4], %s374
      %s377 = sshll.u32 [#allocation10], 4
      %s378 = int_to_ptr.vmem [resolvable:$true] %s377
      %380 = dma.vmem_to_hbm [thread:$0]  %s378, 128, %s5, [#allocation4]
    $region41: #{tpu_custom_call.1} parent=1 // pred_fallthru
      _
    // Predicated region
    $region42: #{tpu_custom_call.1} parent=1 // pred_check
      _
    $region43: #{tpu_custom_call.1} parent=1 // pred_check_branch
      %382 = sbr.rel (0) target = $region45
    $region44: #{tpu_custom_call.1} parent=1 // pred_region
      %383 = dma.done [#allocation4], 128
    $region45: #{tpu_custom_call.1} parent=1 // pred_fallthru
      _
    %384 = vsyncpa [#allocation3], 1
    %385 = vsyncpa [#allocation6], 1
    %386 = vsyncpa [#allocation9], 1
    %387 = vsyncpa [#allocation4], 1

</llo_original>
